<compile_context>
chip_gen: v7x
topology: tpu7x:2x2x1
jax: 0.10.0
libtpu: 0.0.40
codegen_flags: <defaults>
</compile_context>

<pallas_src>
import functools

import jax
import jax.numpy as jnp
from jax.experimental import pallas as pl
from jax.experimental.pallas import tpu as pltpu


def _round_up(x, m):
    return ((x + m - 1) // m) * m


# ----------------------------------------------------------------------------
# Pallas kernels
# ----------------------------------------------------------------------------
def _patch_embed_kernel(x_ref, w_ref, b_ref, pos_ref, o_ref):
    # x: (B*T, Cpp) bf16, w: (Cpp, Ep) bf16, b: (1, Ep), pos: (T, Ep)
    # o: (B, T, Ep) f32 -- Conv2d-as-matmul + bias + position embedding fused.
    y = jnp.dot(x_ref[...], w_ref[...],
                preferred_element_type=jnp.float32) + b_ref[...]
    bsz, t, ep = o_ref.shape
    o_ref[...] = y.reshape(bsz, t, ep) + pos_ref[...]


def _encoder_blocks_kernel(num_head, head_dim, e_real, t_real,
                           x_ref, g1_ref, b1_ref, wqkv_ref, wproj_ref,
                           bproj_ref, g2_ref, b2_ref, wfc1_ref, bfc1_ref,
                           wfc2_ref, bfc2_ref, lng_ref, lnb_ref, o_ref):
    # grid = (batch_block, layer); the output block (Bblk, Tp, Ep) is the
    # resident residual-stream accumulator across the layer axis.
    layer = pl.program_id(1)
    last_layer = pl.num_programs(1) - 1

    @pl.when(layer == 0)
    def _():
        o_ref[...] = x_ref[...]

    xb = o_ref[...]                                   # (Bblk, Tp, Ep) f32
    bblk, tp, ep = xb.shape
    m_rows = bblk * tp
    x = xb.reshape(m_rows, ep)

    lane_idx = jax.lax.broadcasted_iota(jnp.int32, (1, ep), 1)
    lane_ok = lane_idx < e_real                       # real embedding lanes
    key_ok = jax.lax.broadcasted_iota(jnp.int32, (1, 1, tp), 2) < t_real

    def layernorm(z, g, b):
        zm = jnp.where(lane_ok, z, 0.0)
        mu = jnp.sum(zm, axis=-1, keepdims=True) / e_real
        d = jnp.where(lane_ok, z - mu, 0.0)
        var = jnp.sum(d * d, axis=-1, keepdims=True) / e_real
        return d * jax.lax.rsqrt(var + 1e-5) * g + b  # pad lanes of g/b are 0

    # ---- attention branch (pre-norm) ----
    h1 = layernorm(x, g1_ref[0], b1_ref[0]).astype(jnp.bfloat16)
    # single fused QKV matmul; 1/sqrt(head_dim) already folded into wq.
    qkv = jnp.dot(h1, wqkv_ref[0],
                  preferred_element_type=jnp.float32).astype(jnp.bfloat16)
    q = qkv[:, :ep].reshape(bblk, tp, ep)             # lane slices, 128-aligned
    k = qkv[:, ep:2 * ep].reshape(bblk, tp, ep)
    v = qkv[:, 2 * ep:].reshape(bblk, tp, ep)

    ctx = jnp.zeros((bblk, tp, ep), jnp.float32)
    for h in range(num_head):
        lo = h * head_dim
        head_ok = (lane_idx >= lo) & (lane_idx < lo + head_dim)   # (1, Ep)
        # Masking q's lanes restricts the contraction to head h (zero lanes
        # contribute nothing), so the per-head math is exact with packed heads.
        qh = jnp.where(head_ok, q, 0.0)
        s = jnp.einsum('btd,bsd->bts', qh, k,
                       preferred_element_type=jnp.float32)
        s = jnp.where(key_ok, s, -1e30)               # mask padded key tokens
        s = s - jnp.max(s, axis=-1, keepdims=True)
        p = jnp.exp(s)
        p = p * pl.reciprocal(jnp.sum(p, axis=-1, keepdims=True), approx=True)
        ch = jnp.einsum('bts,bsd->btd', p.astype(jnp.bfloat16), v,
                        preferred_element_type=jnp.float32)
        # keep only head h's lanes so heads land on disjoint lanes of ctx
        ctx = ctx + jnp.where(head_ok, ch, 0.0)

    attn = jnp.dot(ctx.reshape(m_rows, ep).astype(jnp.bfloat16), wproj_ref[0],
                   preferred_element_type=jnp.float32) + bproj_ref[0]
    x = x + attn

    # ---- MLP branch (pre-norm) ----
    h2 = layernorm(x, g2_ref[0], b2_ref[0]).astype(jnp.bfloat16)
    m = jnp.dot(h2, wfc1_ref[0],
                preferred_element_type=jnp.float32) + bfc1_ref[0]
    m = 0.5 * m * (1.0 + jax.lax.erf(m * 0.7071067811865476))   # exact GELU
    m = jnp.dot(m.astype(jnp.bfloat16), wfc2_ref[0],
                preferred_element_type=jnp.float32) + bfc2_ref[0]
    x = x + m

    @pl.when(layer == last_layer)
    def _():
        # fused final LayerNorm
        o_ref[...] = layernorm(x, lng_ref[...], lnb_ref[...]).reshape(bblk, tp, ep)

    @pl.when(layer < last_layer)
    def _():
        o_ref[...] = x.reshape(bblk, tp, ep)


# ----------------------------------------------------------------------------
# Pallas wrappers
# ----------------------------------------------------------------------------
def patch_embed(x, w, b, pos):
    # x: (B, T, Cpp).  Whole batch in one grid-less call: M = B*T rows.
    B, T, Cpp = x.shape
    Ep = w.shape[1]
    xf = x.reshape(B * T, Cpp).astype(jnp.bfloat16)   # halve input DMA bytes
    return pl.pallas_call(
        _patch_embed_kernel,
        out_shape=jax.ShapeDtypeStruct((B, T, Ep), jnp.float32),
    )(xf, w, b, pos)


def encoder_blocks(tokens, packed, num_head, e_real, t_real):
    # tokens: (B, Tp, Ep) zero-padded residual stream; all layers fused.
    B, Tp, Ep = tokens.shape
    L = packed["wqkv"].shape[0]
    E3p = packed["wqkv"].shape[2]
    H4p = packed["wfc1"].shape[2]
    hd = e_real // num_head

    # Whole batch per block: maximizes matmul M and removes per-batch grid
    # steps on single-TensorCore chips.
    # TODO(synk): on v7x consider b_blk = B // 2 (parallel axis) for megacore.
    b_blk = B

    kernel = functools.partial(_encoder_blocks_kernel, num_head, hd,
                               e_real, t_real)

    def wspec(r, c):
        # per-layer stacked parameter, indexed by the layer grid axis.
        return pl.BlockSpec((1, r, c), lambda bi, l: (l, 0, 0))

    ln_spec = pl.BlockSpec((1, Ep), lambda bi, l: (0, 0))
    tok_spec = pl.BlockSpec((b_blk, Tp, Ep), lambda bi, l: (bi, 0, 0))

    return pl.pallas_call(
        kernel,
        out_shape=jax.ShapeDtypeStruct((B, Tp, Ep), jnp.float32),
        grid=(B // b_blk, L),
        in_specs=[
            tok_spec,                                  # tokens
            wspec(1, Ep), wspec(1, Ep),                # ln1 g/b
            wspec(Ep, E3p),                            # fused wqkv (q-scaled)
            wspec(Ep, Ep), wspec(1, Ep),               # wproj bproj
            wspec(1, Ep), wspec(1, Ep),                # ln2 g/b
            wspec(Ep, H4p), wspec(1, H4p),             # fc1 w/b
            wspec(H4p, Ep), wspec(1, Ep),              # fc2 w/b
            ln_spec, ln_spec,                          # final LN g/b
        ],
        out_specs=tok_spec,
        compiler_params=pltpu.CompilerParams(
            dimension_semantics=("parallel", "arbitrary")),
    )(tokens,
      packed["g1"], packed["b1"], packed["wqkv"], packed["wproj"],
      packed["bproj"], packed["g2"], packed["b2"],
      packed["wfc1"], packed["bfc1"], packed["wfc2"], packed["bfc2"],
      packed["ln_g"], packed["ln_b"])


# ----------------------------------------------------------------------------
# Parameter construction + packing (padding / bf16 / per-layer stacking)
# ----------------------------------------------------------------------------
def init_params(key, image_size, patch_size, emb_dim, num_layer):
    T = (image_size // patch_size) ** 2
    H4 = 4 * emb_dim
    keys = list(jax.random.split(key, 4 + 4 * num_layer))

    def nrm(shape, std=0.02):
        return jax.random.normal(keys.pop(), shape, jnp.float32) * std

    params = {
        "conv_w": nrm((emb_dim, 3, patch_size, patch_size)),
        "conv_b": nrm((emb_dim,)),
        "cls_token": nrm((1, 1, emb_dim)),          # trunc_normal_ stand-in
        "pos_emb": nrm((T, 1, emb_dim)),
        "ln_g": jnp.ones((emb_dim,), jnp.float32),
        "ln_b": jnp.zeros((emb_dim,), jnp.float32),
        "blocks": [],
    }
    for _ in range(num_layer):
        params["blocks"].append({
            "g1": jnp.ones((emb_dim,), jnp.float32),
            "b1": jnp.zeros((emb_dim,), jnp.float32),
            "wqkv": nrm((emb_dim, 3 * emb_dim)),
            "wproj": nrm((emb_dim, emb_dim)),
            "bproj": jnp.zeros((emb_dim,), jnp.float32),
            "g2": jnp.ones((emb_dim,), jnp.float32),
            "b2": jnp.zeros((emb_dim,), jnp.float32),
            "wfc1": nrm((emb_dim, H4)),
            "bfc1": jnp.zeros((H4,), jnp.float32),
            "wfc2": nrm((H4, emb_dim)),
            "bfc2": jnp.zeros((emb_dim,), jnp.float32),
        })
    return params


def pack_params(params, num_head):
    """Zero-pad to TPU-friendly shapes, cast weights to bf16, stack per layer."""
    E = params["conv_w"].shape[0]
    C, p = params["conv_w"].shape[1], params["conv_w"].shape[2]
    Cpp = C * p * p
    T = params["pos_emb"].shape[0]
    hd = E // num_head
    scale = hd ** -0.5
    Ep = _round_up(E, 128)
    H4 = 4 * E
    H4p = _round_up(H4, 128)
    blocks = params["blocks"]
    bf16 = jnp.bfloat16

    def pad_to(a, shape):
        out = jnp.zeros(shape, jnp.float32)
        return out.at[tuple(slice(0, s) for s in a.shape)].set(a)

    def pack_qkv(wqkv):
        # heads stay packed in the original E lanes; attention softmax scale
        # is folded into the q weight at pack time.
        wq = pad_to(wqkv[:, :E] * scale, (Ep, Ep))
        wk = pad_to(wqkv[:, E:2 * E], (Ep, Ep))
        wv = pad_to(wqkv[:, 2 * E:], (Ep, Ep))
        return jnp.concatenate([wq, wk, wv], axis=1)      # (Ep, 3*Ep)

    stk = lambda xs: jnp.stack(xs, axis=0)

    packed = {
        "conv_w": pad_to(params["conv_w"].reshape(E, Cpp).T, (Cpp, Ep)).astype(bf16),
        "conv_b": pad_to(params["conv_b"].reshape(1, E), (1, Ep)),
        "pos": pad_to(params["pos_emb"].reshape(T, E), (T, Ep)),
        "cls": pad_to(params["cls_token"].reshape(1, E), (1, Ep)),
        "ln_g": pad_to(params["ln_g"].reshape(1, E), (1, Ep)),
        "ln_b": pad_to(params["ln_b"].reshape(1, E), (1, Ep)),
        "g1": stk([pad_to(b["g1"].reshape(1, E), (1, Ep)) for b in blocks]),
        "b1": stk([pad_to(b["b1"].reshape(1, E), (1, Ep)) for b in blocks]),
        "wqkv": stk([pack_qkv(b["wqkv"]) for b in blocks]).astype(bf16),
        "wproj": stk([pad_to(b["wproj"], (Ep, Ep)) for b in blocks]).astype(bf16),
        "bproj": stk([pad_to(b["bproj"].reshape(1, E), (1, Ep)) for b in blocks]),
        "g2": stk([pad_to(b["g2"].reshape(1, E), (1, Ep)) for b in blocks]),
        "b2": stk([pad_to(b["b2"].reshape(1, E), (1, Ep)) for b in blocks]),
        "wfc1": stk([pad_to(b["wfc1"], (Ep, H4p)) for b in blocks]).astype(bf16),
        "bfc1": stk([pad_to(b["bfc1"].reshape(1, H4), (1, H4p)) for b in blocks]),
        "wfc2": stk([pad_to(b["wfc2"], (H4p, Ep)) for b in blocks]).astype(bf16),
        "bfc2": stk([pad_to(b["bfc2"].reshape(1, E), (1, Ep)) for b in blocks]),
    }
    return packed


# ----------------------------------------------------------------------------
# MAE_Encoder forward
# ----------------------------------------------------------------------------
def mae_encoder_forward(images, params, packed, shuffle_key, *, patch_size,
                        mask_ratio, num_head):
    B, C, H, W = images.shape
    p = patch_size
    hp, wp = H // p, W // p
    T = hp * wp
    E = params["conv_w"].shape[0]
    Ep = packed["conv_w"].shape[1]
    Cpp = C * p * p

    # patchify == Conv2d(kernel=stride=patch): extract non-overlapping patches;
    # the matmul with the flattened conv weight + bias + pos-emb is fused in
    # the patch-embed Pallas kernel.
    x = images.reshape(B, C, hp, p, wp, p)
    x = jnp.transpose(x, (0, 2, 4, 1, 3, 5)).reshape(B, T, Cpp)   # b (h w) (c ph pw)
    patches = patch_embed(x, packed["conv_w"], packed["conv_b"], packed["pos"])

    # PatchShuffle: per-batch random permutation, keep (1 - ratio) * T patches.
    # TODO(synk): the data-dependent gather stays in XLA; a Pallas version
    # would need scalar-prefetch / pl.Element row-gather into the encoder call.
    remain_T = int((1 - mask_ratio) * T)
    keys = jax.random.split(shuffle_key, B)
    forward_indexes = jnp.stack(
        [jax.random.permutation(keys[b], T) for b in range(B)], axis=-1
    ).astype(jnp.int32)                                           # (T, B)
    backward_indexes = jnp.argsort(forward_indexes, axis=0).astype(jnp.int32)

    pt = jnp.transpose(patches, (1, 0, 2))                        # (T, B, Ep)
    pt = jnp.take_along_axis(pt, forward_indexes[:, :, None], axis=0)
    pt = pt[:remain_T]

    # prepend cls token, go to (B, Tn, Ep), pad tokens to a multiple of 16
    # sublanes (so bf16 reshapes inside the kernel never cross a tile).
    cls = jnp.broadcast_to(packed["cls"][None], (1, B, Ep))
    tokens = jnp.concatenate([cls, pt], axis=0)                   # (Tn, B, Ep)
    Tn = remain_T + 1
    tokens = jnp.transpose(tokens, (1, 0, 2))                     # (B, Tn, Ep)
    Tp = _round_up(Tn, 16)
    tokens = jnp.pad(tokens, ((0, 0), (0, Tp - Tn), (0, 0)))

    # fused transformer blocks + final layer norm (single Pallas kernel)
    feats = encoder_blocks(tokens, packed, num_head, E, Tn)       # (B, Tp, Ep)

    feats = feats[:, :Tn, :E]                                     # crop padding
    feats = jnp.transpose(feats, (1, 0, 2))                       # (Tn, B, E)
    return feats, backward_indexes


# ----------------------------------------------------------------------------
if __name__ == "__main__":
    image_size, patch_size = 16, 2
    emb_dim, num_layer, num_head = 48, 2, 3
    mask_ratio = 0.75
    B = 2

    root = jax.random.PRNGKey(0)
    k_img, k_param, k_shuffle = jax.random.split(root, 3)

    images = jax.random.normal(k_img, (B, 3, image_size, image_size), jnp.float32)
    params = init_params(k_param, image_size, patch_size, emb_dim, num_layer)
    packed = pack_params(params, num_head)

    feats, backward_indexes = mae_encoder_forward(
        images, params, packed, k_shuffle,
        patch_size=patch_size, mask_ratio=mask_ratio, num_head=num_head)
    jax.block_until_ready(feats)
    jax.block_until_ready(backward_indexes)

    T = (image_size // patch_size) ** 2
    remain_T = int((1 - mask_ratio) * T)
    assert feats.shape == (remain_T + 1, B, emb_dim)
    assert backward_indexes.shape == (T, B)
    assert bool(jnp.all(jnp.isfinite(feats)))
    print("KERNEL_OK")
</pallas_src>

<mosaic_0001>
module attributes {stable_mosaic.version = 11 : i64} {
  func.func @_patch_embed_kernel(%arg0: memref<128x12xbf16, #tpu.memory_space<vmem>>, %arg1: memref<12x128xbf16, #tpu.memory_space<vmem>>, %arg2: memref<1x128xf32, #tpu.memory_space<vmem>>, %arg3: memref<64x128xf32, #tpu.memory_space<vmem>>, %arg4: memref<2x64x128xf32, #tpu.memory_space<vmem>>) attributes {dimension_semantics = [], scalar_prefetch = 0 : i64, scratch_operands = 0 : i64, tpu.core_type = #tpu.core_type<tc>} {
    %c0 = arith.constant 0 : index
    %c0_0 = arith.constant 0 : index
    %0 = vector.load %arg0[%c0, %c0_0] : memref<128x12xbf16, #tpu.memory_space<vmem>>, vector<128x12xbf16>
    %c0_1 = arith.constant 0 : index
    %c0_2 = arith.constant 0 : index
    %1 = vector.load %arg1[%c0_1, %c0_2] : memref<12x128xbf16, #tpu.memory_space<vmem>>, vector<12x128xbf16>
    %cst = arith.constant dense<0.000000e+00> : vector<128x128xf32>
    %2 = tpu.matmul %0, %1, %cst {dimension_numbers = #tpu.dot_dimension_numbers<[1], [0], [0], [1], [0, 0, 1, 1], [], []>} : vector<128x12xbf16>, vector<12x128xbf16>, vector<128x128xf32> -> vector<128x128xf32>
    %c0_3 = arith.constant 0 : index
    %c0_4 = arith.constant 0 : index
    %3 = vector.load %arg2[%c0_3, %c0_4] : memref<1x128xf32, #tpu.memory_space<vmem>>, vector<1x128xf32>
    %4 = vector.broadcast %3 : vector<1x128xf32> to vector<128x128xf32>
    %5 = arith.addf %2, %4 : vector<128x128xf32>
    %6 = vector.shape_cast %5 : vector<128x128xf32> to vector<2x64x128xf32>
    %c0_5 = arith.constant 0 : index
    %c0_6 = arith.constant 0 : index
    %7 = vector.load %arg3[%c0_5, %c0_6] : memref<64x128xf32, #tpu.memory_space<vmem>>, vector<64x128xf32>
    %8 = vector.shape_cast %7 : vector<64x128xf32> to vector<1x64x128xf32>
    %9 = vector.broadcast %8 : vector<1x64x128xf32> to vector<2x64x128xf32>
    %10 = arith.addf %6, %9 : vector<2x64x128xf32>
    %c0_7 = arith.constant 0 : index
    %c0_8 = arith.constant 0 : index
    %c0_9 = arith.constant 0 : index
    %11 = vector.load %arg4[%c0_7, %c0_8, %c0_9] : memref<2x64x128xf32, #tpu.memory_space<vmem>>, vector<2x64x128xf32>
    tpu.vector_store %arg4[%c0_7, %c0_8, %c0_9], %10 {strides = array<i32>} : memref<2x64x128xf32, #tpu.memory_space<vmem>>, vector<2x64x128xf32>,
    return
  }
}

</mosaic_0001>

<llo_original>
// kernel: tpu_custom_call.1
$region0: #{tpu_custom_call.1}
  #allocation0 [shape = 'u32[]', space=smem, size = 0x4, offset = 0x4, fixed_abs, tag = 'smem constant byte address 0x4 - core index']
  #allocation1 [shape = 'u32[144,128]{1,0:T(1,128)}', space=vmem, size = 0x12000, scoped, tag = 'internal scratch']
  %s0 = inlined_call_operand.vmem [shape: bf16[128,12], index: 0, kind: input, shape index: {}]
  %s1 = inlined_call_operand.vmem [shape: bf16[12,128], index: 1, kind: input, shape index: {}]
  %s2 = inlined_call_operand.vmem [shape: f32[1,128], index: 2, kind: input, shape index: {}]
  %s3 = inlined_call_operand.vmem [shape: f32[64,128], index: 3, kind: input, shape index: {}]
  %s4 = inlined_call_operand.hbm [shape: f32[2,64,128], index: 4, kind: output, shape index: {}]
  %s5 = sld [smem:[#allocation0]]
  $region26: #{tpu_custom_call.1} parent=0
    _
  %s7 = ssub.s32 1, %s5
  %s8 = scalar_select 0, %s7, %s5
  $region1: #{tpu_custom_call.1} parent=0
    #allocation2 [shape = 'u8[65536]{0}', space=vmem, size = 0x10000, scoped, tag = 'output window, operand 0, single buffered']
    #allocation3 [shape = 's32[1]{0}', space=sflag, size = 0x4, scoped, tag = 'scoped memory for tpu_custom_call.1']
    %9 = vsyncpa [#allocation3], 0
    // Predicated region
    $region2: #{tpu_custom_call.1} parent=1 // pred_check
      _
    $region3: #{tpu_custom_call.1} parent=1 // pred_check_branch
      %11 = sbr.rel (0) target = $region5
    $region4: #{tpu_custom_call.1} parent=1 // pred_region
      _
    $region5: #{tpu_custom_call.1} parent=1 // pred_fallthru
      _
    // Predicated region
    $region6: #{tpu_custom_call.1} parent=1 // pred_check
      _
    $region7: #{tpu_custom_call.1} parent=1 // pred_check_branch
      %13 = sbr.rel (0) target = $region9
    $region8: #{tpu_custom_call.1} parent=1 // pred_region
      _
    $region9: #{tpu_custom_call.1} parent=1 // pred_fallthru
      _
    // Predicated region
    $region10: #{tpu_custom_call.1} parent=1 // pred_check
      _
    $region11: #{tpu_custom_call.1} parent=1 // pred_check_branch
      %15 = sbr.rel (0) target = $region13
    $region12: #{tpu_custom_call.1} parent=1 // pred_region
      _
    $region13: #{tpu_custom_call.1} parent=1 // pred_fallthru
      _
    // Predicated region
    $region14: #{tpu_custom_call.1} parent=1 // pred_check
      _
    $region15: #{tpu_custom_call.1} parent=1 // pred_check_branch
      %17 = sbr.rel (0) target = $region17
    $region16: #{tpu_custom_call.1} parent=1 // pred_region
      _
    $region17: #{tpu_custom_call.1} parent=1 // pred_fallthru
      _
    %v19 = vld [vmem:[%s0] sm:$0xf]
    %v20 = vld [vmem:[%s0 + $0x4] sm:$0xf]
    %v21 = vld [vmem:[%s0 + $0x8] sm:$0xf]
    %v22 = vld [vmem:[%s0 + $0xc] sm:$0xf]
    %v23 = vld [vmem:[%s0 + $0x10] sm:$0xf]
    %v24 = vld [vmem:[%s0 + $0x14] sm:$0xf]
    %v25 = vld [vmem:[%s0 + $0x18] sm:$0xf]
    %v26 = vld [vmem:[%s0 + $0x1c] sm:$0xf]
    %v27 = vld [vmem:[%s0 + $0x20] sm:$0xf]
    %v28 = vld [vmem:[%s0 + $0x24] sm:$0xf]
    %v29 = vld [vmem:[%s0 + $0x28] sm:$0xf]
    %v30 = vld [vmem:[%s0 + $0x2c] sm:$0xf]
    %v31 = vld [vmem:[%s0 + $0x30] sm:$0xf]
    %v32 = vld [vmem:[%s0 + $0x34] sm:$0xf]
    %v33 = vld [vmem:[%s0 + $0x38] sm:$0xf]
    %v34 = vld [vmem:[%s0 + $0x3c] sm:$0xf]
    %v35 = vld [vmem:[%s1] sm:$0xf]
    %v36 = vld [vmem:[%s1 + $0x4] sm:$0x3]
    %v37 = vld [vmem:[%s2] sm:$0x1]
    %v39 = vlaneseq
    %v40 = vshrl.u32 %v39, 7
    %v41 = vsub.s32 0, %v40
    %v42 = vrot.slane %v37, %v41
    %v60 = vunpack.c.l.b16 %v19
    %v61 = vunpack.c.l.b16 %v20
    %v62 = vunpack.c.l.b16 %v21
    %v63 = vunpack.c.l.b16 %v22
    %v64 = vunpack.c.l.b16 %v23
    %v65 = vunpack.c.l.b16 %v24
    %v66 = vunpack.c.l.b16 %v25
    %v67 = vunpack.c.l.b16 %v26
    %v68 = vunpack.c.l.b16 %v27
    %v69 = vunpack.c.l.b16 %v28
    %v70 = vunpack.c.l.b16 %v29
    %v71 = vunpack.c.l.b16 %v30
    %v72 = vunpack.c.l.b16 %v31
    %v73 = vunpack.c.l.b16 %v32
    %v74 = vunpack.c.l.b16 %v33
    %v75 = vunpack.c.l.b16 %v34
    %v76 = vpack.c.b16 %v61, %v60
    %v77 = vpack.c.b16 %v63, %v62
    %v78 = vpack.c.b16 %v65, %v64
    %v79 = vpack.c.b16 %v67, %v66
    %v80 = vpack.c.b16 %v69, %v68
    %v81 = vpack.c.b16 %v71, %v70
    %v82 = vpack.c.b16 %v73, %v72
    %v83 = vpack.c.b16 %v75, %v74
    %v86 = vunpack.c.l.b16 %v35
    %v87 = vunpack.c.l.b16 %v36
    %v88 = vpack.c.b16 %v87, %v86
    %vm89 = vcmask 97280
    %v91 = vsel %vm89, %v76, 0
    %v94 = vsel %vm89, %v77, 0
    %v97 = vsel %vm89, %v78, 0
    %v100 = vsel %vm89, %v79, 0
    %v103 = vsel %vm89, %v80, 0
    %v106 = vsel %vm89, %v81, 0
    %v109 = vsel %vm89, %v82, 0
    %v112 = vsel %vm89, %v83, 0
    %vm114 = vcmask 1045504
    %v116 = vsel %vm114, %v88, 0
    %118 = vmatprep.subr.bf16.mxu0 0
    %119 = vmatpush1.bf16.msra.mxu0 %v116
    %120 = vmatprep.subr.bf16.mxu0 0
    %121 = vmatpush1.bf16.msra.mxu0 0
    %122 = vmatprep.subr.bf16.mxu0 0
    %123 = vmatpush1.bf16.msra.mxu0 0
    %124 = vmatprep.subr.bf16.mxu0 0
    %125 = vmatpush1.bf16.msra.mxu0 0
    %126 = vmatprep.subr.bf16.mxu0 0
    %127 = vmatpush1.bf16.msra.mxu0 0
    %128 = vmatprep.subr.bf16.mxu0 0
    %129 = vmatpush1.bf16.msra.mxu0 0
    %130 = vmatprep.subr.bf16.mxu0 0
    %131 = vmatpush1.bf16.msra.mxu0 0
    %132 = vmatprep.subr.bf16.mxu0 0
    %133 = vmatpush1.bf16.msra.mxu0 0
    %134 = vmatprep.subr.bf16.mxu0 0
    %135 = vmatpush1.bf16.msra.mxu0 0
    %136 = vmatprep.subr.bf16.mxu0 0
    %137 = vmatpush1.bf16.msra.mxu0 0
    %138 = vmatprep.subr.bf16.mxu0 0
    %139 = vmatpush1.bf16.msra.mxu0 0
    %140 = vmatprep.subr.bf16.mxu0 0
    %141 = vmatpush1.bf16.msra.mxu0 0
    %142 = vmatprep.subr.bf16.mxu0 0
    %143 = vmatpush1.bf16.msra.mxu0 0
    %144 = vmatprep.subr.bf16.mxu0 0
    %145 = vmatpush1.bf16.msra.mxu0 0
    %146 = vmatprep.subr.bf16.mxu0 0
    %147 = vmatpush1.bf16.msra.mxu0 0
    %148 = vmatprep.subr.bf16.mxu0 0
    %149 = vmatpush1.bf16.msra.mxu0 0
    %150 = vmatprep.mubr.bf16.mxu0 0
    %151 = vmatmul.mubr.bf16.gmra.mrb[0].mxu0 %v91
    %v152 = vpop.f32.mrb[0].mxu0
    %v153 = vadd.f32 %v42, %v152
    %v154 = vpop.f32.mrb[0].mxu0
    %v155 = vpop.f32.mrb[0].mxu0
    %v156 = vadd.f32 %v42, %v155
    %v157 = vpop.f32.mrb[0].mxu0
    %158 = vmatprep.mubr.bf16.mxu0 0
    %159 = vmatmul.mubr.bf16.gmra.mrb[0].mxu0 %v94
    %v160 = vpop.f32.mrb[0].mxu0
    %v161 = vadd.f32 %v42, %v160
    %v162 = vpop.f32.mrb[0].mxu0
    %v163 = vpop.f32.mrb[0].mxu0
    %v164 = vadd.f32 %v42, %v163
    %v165 = vpop.f32.mrb[0].mxu0
    %166 = vmatprep.mubr.bf16.mxu0 0
    %167 = vmatmul.mubr.bf16.gmra.mrb[0].mxu0 %v97
    %v168 = vpop.f32.mrb[0].mxu0
    %v169 = vadd.f32 %v42, %v168
    %v170 = vpop.f32.mrb[0].mxu0
    %v171 = vpop.f32.mrb[0].mxu0
    %v172 = vadd.f32 %v42, %v171
    %v173 = vpop.f32.mrb[0].mxu0
    %174 = vmatprep.mubr.bf16.mxu0 0
    %175 = vmatmul.mubr.bf16.gmra.mrb[0].mxu0 %v100
    %v176 = vpop.f32.mrb[0].mxu0
    %v177 = vadd.f32 %v42, %v176
    %v178 = vpop.f32.mrb[0].mxu0
    %v179 = vpop.f32.mrb[0].mxu0
    %v180 = vadd.f32 %v42, %v179
    %v181 = vpop.f32.mrb[0].mxu0
    %182 = vmatprep.mubr.bf16.mxu0 0
    %183 = vmatmul.mubr.bf16.gmra.mrb[0].mxu0 %v103
    %v184 = vpop.f32.mrb[0].mxu0
    %v185 = vadd.f32 %v42, %v184
    %v186 = vpop.f32.mrb[0].mxu0
    %v187 = vpop.f32.mrb[0].mxu0
    %v188 = vadd.f32 %v42, %v187
    %v189 = vpop.f32.mrb[0].mxu0
    %190 = vmatprep.mubr.bf16.mxu0 0
    %191 = vmatmul.mubr.bf16.gmra.mrb[0].mxu0 %v106
    %v192 = vpop.f32.mrb[0].mxu0
    %v193 = vadd.f32 %v42, %v192
    %v194 = vpop.f32.mrb[0].mxu0
    %v195 = vpop.f32.mrb[0].mxu0
    %v196 = vadd.f32 %v42, %v195
    %v197 = vpop.f32.mrb[0].mxu0
    %198 = vmatprep.mubr.bf16.mxu0 0
    %199 = vmatmul.mubr.bf16.gmra.mrb[0].mxu0 %v109
    %v200 = vpop.f32.mrb[0].mxu0
    %v201 = vadd.f32 %v42, %v200
    %v202 = vpop.f32.mrb[0].mxu0
    %v203 = vpop.f32.mrb[0].mxu0
    %v204 = vadd.f32 %v42, %v203
    %v205 = vpop.f32.mrb[0].mxu0
    %206 = vmatprep.mubr.bf16.mxu0 0
    %207 = vmatmul.mubr.bf16.gmra.mrb[0].mxu0 %v112
    %v208 = vpop.f32.mrb[0].mxu0
    %v209 = vadd.f32 %v42, %v208
    %v210 = vpop.f32.mrb[0].mxu0
    %v211 = vpop.f32.mrb[0].mxu0
    %v212 = vadd.f32 %v42, %v211
    %v213 = vpop.f32.mrb[0].mxu0
    %214 = vdwg.mxu0
    %v215 = vld [vmem:[%s3] sm:$0xff]
    %v216 = vld [vmem:[%s3 + $0x8] sm:$0xff]
    %v217 = vld [vmem:[%s3 + $0x10] sm:$0xff]
    %v218 = vld [vmem:[%s3 + $0x18] sm:$0xff]
    %v219 = vld [vmem:[%s3 + $0x20] sm:$0xff]
    %v220 = vld [vmem:[%s3 + $0x28] sm:$0xff]
    %v221 = vld [vmem:[%s3 + $0x30] sm:$0xff]
    %v222 = vld [vmem:[%s3 + $0x38] sm:$0xff]
    %v223 = vadd.f32 %v153, %v215
    %v224 = vadd.f32 %v156, %v216
    %v225 = vadd.f32 %v161, %v217
    %v226 = vadd.f32 %v164, %v218
    %v227 = vadd.f32 %v169, %v219
    %v228 = vadd.f32 %v172, %v220
    %v229 = vadd.f32 %v177, %v221
    %v230 = vadd.f32 %v180, %v222
    %v231 = vadd.f32 %v185, %v215
    %v232 = vadd.f32 %v188, %v216
    %v233 = vadd.f32 %v193, %v217
    %v234 = vadd.f32 %v196, %v218
    %v235 = vadd.f32 %v201, %v219
    %v236 = vadd.f32 %v204, %v220
    %v237 = vadd.f32 %v209, %v221
    %v238 = vadd.f32 %v212, %v222
    %239 = vst [vmem:[#allocation2] sm:$0xff] %v223
    %240 = vst [vmem:[#allocation2 + $0x8] sm:$0xff] %v224
    %241 = vst [vmem:[#allocation2 + $0x10] sm:$0xff] %v225
    %242 = vst [vmem:[#allocation2 + $0x18] sm:$0xff] %v226
    %243 = vst [vmem:[#allocation2 + $0x20] sm:$0xff] %v227
    %244 = vst [vmem:[#allocation2 + $0x28] sm:$0xff] %v228
    %245 = vst [vmem:[#allocation2 + $0x30] sm:$0xff] %v229
    %246 = vst [vmem:[#allocation2 + $0x38] sm:$0xff] %v230
    %247 = vst [vmem:[#allocation2 + $0x40] sm:$0xff] %v231
    %248 = vst [vmem:[#allocation2 + $0x48] sm:$0xff] %v232
    %249 = vst [vmem:[#allocation2 + $0x50] sm:$0xff] %v233
    %250 = vst [vmem:[#allocation2 + $0x58] sm:$0xff] %v234
    %251 = vst [vmem:[#allocation2 + $0x60] sm:$0xff] %v235
    %252 = vst [vmem:[#allocation2 + $0x68] sm:$0xff] %v236
    %253 = vst [vmem:[#allocation2 + $0x70] sm:$0xff] %v237
    %254 = vst [vmem:[#allocation2 + $0x78] sm:$0xff] %v238
    // Predicated region
    $region18: #{tpu_custom_call.1} parent=1 // pred_check
      _
    $region19: #{tpu_custom_call.1} parent=1 // pred_check_branch
      %256 = sbr.rel (0) target = $region21
    $region20: #{tpu_custom_call.1} parent=1 // pred_region
      %s258 = ssub.s32 2048, 2048
      %259 = vsyncadd [#allocation3], %s258
      %s260 = sshll.u32 [#allocation2], 4
      %s261 = int_to_ptr.vmem [resolvable:$true] %s260
      %266 = dma.vmem_to_hbm [thread:$0]  %s261, 2048, %s4, [#allocation3], 128, 128, 8
    $region21: #{tpu_custom_call.1} parent=1 // pred_fallthru
      _
    // Predicated region
    $region22: #{tpu_custom_call.1} parent=1 // pred_check
      _
    $region23: #{tpu_custom_call.1} parent=1 // pred_check_branch
      %268 = sbr.rel (0) target = $region25
    $region24: #{tpu_custom_call.1} parent=1 // pred_region
      %269 = dma.done [#allocation3], 2048
    $region25: #{tpu_custom_call.1} parent=1 // pred_fallthru
      _
    %270 = vsyncpa [#allocation3], 1

</llo_original>
